<compile_context>
chip_gen: v5e
topology: v5e:2x2
jax: 0.10.0
libtpu: 0.0.40
codegen_flags: <defaults>
</compile_context>

<pallas_src>
import functools

import jax
import jax.numpy as jnp
import numpy as np
from jax.experimental import pallas as pl
from jax.experimental.pallas import tpu as pltpu

DEF = jax.lax.Precision.DEFAULT


# ---------------------------------------------------------------------------
# Single fused kernel: fused-QKV projection + batch-axis softmax + V@attn +
# per-batch output projection.  grid=(): everything is VMEM-resident.
# ---------------------------------------------------------------------------
def _fused_mha_kernel(text_ref, wqkv_ref, wsum_ref, out_ref, *, B, S, d):
    # bf16 MXU operands (DEFAULT precision already rounds through bf16 on the
    # MXU, so accuracy is unchanged; explicit bf16 halves operand streaming).
    x = text_ref[...].astype(jnp.bfloat16)                         # (B*S, d)
    wqkv = wqkv_ref[...].astype(jnp.bfloat16)                      # (d, 3d)

    # One fat QKV projection instead of three tiny ones.
    qkv = jnp.dot(x, wqkv, preferred_element_type=jnp.float32)     # (B*S, 3d) f32

    inv_sqrt_d = 1.0 / (d ** 0.5)
    # Fold the 1/sqrt(d) scale into q (scales B*S*d elems once, not B*d*d).
    q = qkv[:, 0 * d:1 * d] * inv_sqrt_d                           # (B*S, d) f32
    k = qkv[:, 1 * d:2 * d]                                        # (B*S, d) f32
    v = qkv[:, 2 * d:3 * d]                                        # (B*S, d) f32

    # Per-batch attention logits K_b^T @ Q_b: contract the S axis directly
    # (dim 0 of both (S, d) operands) -> no materialized transpose of K.
    # Kept with f32 operands / DEFAULT precision (proven lowering for A^T B).
    kq_dims = (((0,), (0,)), ((), ()))
    logits = []
    for b in range(B):                                             # static; B tiny
        kb = k[b * S:(b + 1) * S, :]
        qb = q[b * S:(b + 1) * S, :]
        logits.append(
            jax.lax.dot_general(kb, qb, kq_dims,
                                preferred_element_type=jnp.float32,
                                precision=DEF))                    # (d, d) f32

    # Legacy F.softmax implicit dim=0 for a 3-D input: softmax ACROSS THE BATCH.
    # All batches are resident here, so the coupling is exact.  Kept in f32.
    m = logits[0]
    for b in range(1, B):
        m = jnp.maximum(m, logits[b])
    es = [jnp.exp(l - m) for l in logits]
    denom = es[0]
    for b in range(1, B):
        denom = denom + es[b]
    inv_denom = pl.reciprocal(denom, approx=True)                  # EUP slot (free)

    # H_b = V_b @ attn_b, then cat([H]*h,-1) @ W == H_b @ w_sum projected
    # straight into the output rows -> no (B*S, d) concat / scratch round-trip.
    wsum = wsum_ref[...].astype(jnp.bfloat16)                      # (d, h*d)
    for b in range(B):
        attn_b = (es[b] * inv_denom).astype(jnp.bfloat16)          # (d, d)
        vb = v[b * S:(b + 1) * S, :].astype(jnp.bfloat16)          # (S, d)
        hv_b = jnp.dot(vb, attn_b,
                       preferred_element_type=jnp.float32)         # (S, d) f32
        out_ref[b * S:(b + 1) * S, :] = jnp.dot(
            hv_b.astype(jnp.bfloat16), wsum,
            preferred_element_type=jnp.float32)                    # (S, h*d)


def multihead_attention_att_layer(text, WQ, Wk, Wv, W, h):
    B, S, d = text.shape
    hd = h * d
    assert W.shape == (hd, hd)

    # Pure weight transforms (amortized / constant-folded across calls):
    #  * fuse the three projection weights into one (d, 3d) slab;
    #  * cat([H]*h, -1) @ W == H @ (sum of the h (d, hd) row-blocks of W).
    wqkv = jnp.concatenate([WQ, Wk, Wv], axis=1)                   # (d, 3d)
    w_sum = W.reshape(h, d, hd).sum(axis=0)                        # (d, hd)

    text2 = text.reshape(B * S, d)                                 # free row-major reshape

    # TODO(synk): the module's `print(H.size())` debug print is intentionally omitted.
    out2 = pl.pallas_call(
        functools.partial(_fused_mha_kernel, B=B, S=S, d=d),
        out_shape=jax.ShapeDtypeStruct((B * S, hd), jnp.float32),
        # grid=() single invocation: no 1-step pipeline prologue/epilogue and no
        # double-buffering of the (tiny, <100 KiB) working set.
        in_specs=[pl.BlockSpec(memory_space=pltpu.MemorySpace.VMEM)
                  for _ in range(3)],
        out_specs=pl.BlockSpec(memory_space=pltpu.MemorySpace.VMEM),
    )(text2, wqkv, w_sum)

    return out2.reshape(B, S, hd)


# ---------------------------------------------------------------------------
# Pure-JAX reference (mirrors the PyTorch forward; same DEFAULT matmul
# precision as the kernel so the comparison tracks the bf16 MXU path).
# ---------------------------------------------------------------------------
def reference(text, WQ, Wk, Wv, W, h):
    d = text.shape[-1]
    Q = jnp.einsum('bsd,de->bse', text, WQ, precision=DEF)
    K = jnp.einsum('bsd,de->bse', text, Wk, precision=DEF)
    V = jnp.einsum('bsd,de->bse', text, Wv, precision=DEF)
    H = jnp.einsum('bsi,bsj->bij', K, Q, precision=DEF) / (d ** 0.5)   # bmm(K^T, Q)
    H = jax.nn.softmax(H, axis=0)                                      # legacy implicit dim=0 (3-D)
    H = jnp.einsum('bsd,bde->bse', V, H, precision=DEF)                # bmm(V, H)
    MultiH = jnp.concatenate([H] * h, axis=-1)
    return jnp.einsum('bsk,kn->bsn', MultiH, W, precision=DEF)


if __name__ == "__main__":
    B, S, d, h = 2, 8, 32, 2

    key = jax.random.PRNGKey(0)
    k1, k2, k3, k4, k5 = jax.random.split(key, 5)
    text = 0.25 * jax.random.normal(k1, (B, S, d), jnp.float32)   # small-magnitude embeddings
    WQ = jax.random.normal(k2, (d, d), jnp.float32)               # nn.Parameter(torch.randn(d, d))
    Wk = jax.random.normal(k3, (d, d), jnp.float32)
    Wv = jax.random.normal(k4, (d, d), jnp.float32)
    W = jax.random.normal(k5, (h * d, h * d), jnp.float32)

    out = multihead_attention_att_layer(text, WQ, Wk, Wv, W, h)
    out = jax.block_until_ready(out)

    ref = reference(text, WQ, Wk, Wv, W, h)
    assert out.shape == (B, S, h * d)
    # bf16-MXU-level tolerance (single-pass bf16 matmuls with randn-scale weights;
    # the W row-sum rewrite and the approx reciprocal also reorder/perturb FP slightly).
    np.testing.assert_allclose(np.asarray(out), np.asarray(ref), rtol=2e-2, atol=5e-1)

    print("KERNEL_OK")
</pallas_src>

<mosaic_0001>
module attributes {stable_mosaic.version = 11 : i64} {
  func.func @_fused_mha_kernel(%arg0: memref<16x32xf32, #tpu.memory_space<vmem>>, %arg1: memref<32x96xf32, #tpu.memory_space<vmem>>, %arg2: memref<32x64xf32, #tpu.memory_space<vmem>>, %arg3: memref<16x64xf32, #tpu.memory_space<vmem>>) attributes {dimension_semantics = [], scalar_prefetch = 0 : i64, scratch_operands = 0 : i64, tpu.core_type = #tpu.core_type<tc>} {
    %c0 = arith.constant 0 : index
    %c0_0 = arith.constant 0 : index
    %0 = vector.load %arg0[%c0, %c0_0] : memref<16x32xf32, #tpu.memory_space<vmem>>, vector<16x32xf32>
    %1 = arith.truncf %0 : vector<16x32xf32> to vector<16x32xbf16>
    %c0_1 = arith.constant 0 : index
    %c0_2 = arith.constant 0 : index
    %2 = vector.load %arg1[%c0_1, %c0_2] : memref<32x96xf32, #tpu.memory_space<vmem>>, vector<32x96xf32>
    %3 = arith.truncf %2 : vector<32x96xf32> to vector<32x96xbf16>
    %cst = arith.constant dense<0.000000e+00> : vector<16x96xf32>
    %4 = tpu.matmul %1, %3, %cst {dimension_numbers = #tpu.dot_dimension_numbers<[1], [0], [0], [1], [0, 0, 1, 1], [], []>} : vector<16x32xbf16>, vector<32x96xbf16>, vector<16x96xf32> -> vector<16x96xf32>
    %5 = vector.extract_strided_slice %4 {offsets = [0, 0], sizes = [16, 32], strides = [1, 1]} : vector<16x96xf32> to vector<16x32xf32>
    %cst_3 = arith.constant 0.176776692 : f32
    %6 = vector.broadcast %cst_3 : f32 to vector<16x32xf32>
    %7 = arith.mulf %5, %6 : vector<16x32xf32>
    %8 = vector.extract_strided_slice %4 {offsets = [0, 32], sizes = [16, 32], strides = [1, 1]} : vector<16x96xf32> to vector<16x32xf32>
    %9 = vector.extract_strided_slice %4 {offsets = [0, 64], sizes = [16, 32], strides = [1, 1]} : vector<16x96xf32> to vector<16x32xf32>
    %10 = vector.extract_strided_slice %8 {offsets = [0, 0], sizes = [8, 32], strides = [1, 1]} : vector<16x32xf32> to vector<8x32xf32>
    %11 = vector.extract_strided_slice %7 {offsets = [0, 0], sizes = [8, 32], strides = [1, 1]} : vector<16x32xf32> to vector<8x32xf32>
    %cst_4 = arith.constant dense<0.000000e+00> : vector<32x32xf32>
    %12 = tpu.matmul %10, %11, %cst_4 {dimension_numbers = #tpu.dot_dimension_numbers<[0], [0], [1], [1], [0, 1, 1, 1], [], []>} : vector<8x32xf32>, vector<8x32xf32>, vector<32x32xf32> -> vector<32x32xf32>
    %13 = vector.extract_strided_slice %8 {offsets = [8, 0], sizes = [8, 32], strides = [1, 1]} : vector<16x32xf32> to vector<8x32xf32>
    %14 = vector.extract_strided_slice %7 {offsets = [8, 0], sizes = [8, 32], strides = [1, 1]} : vector<16x32xf32> to vector<8x32xf32>
    %cst_5 = arith.constant dense<0.000000e+00> : vector<32x32xf32>
    %15 = tpu.matmul %13, %14, %cst_5 {dimension_numbers = #tpu.dot_dimension_numbers<[0], [0], [1], [1], [0, 1, 1, 1], [], []>} : vector<8x32xf32>, vector<8x32xf32>, vector<32x32xf32> -> vector<32x32xf32>
    %16 = arith.maximumf %12, %15 : vector<32x32xf32>
    %17 = arith.subf %12, %16 : vector<32x32xf32>
    %18 = math.exp %17 : vector<32x32xf32>
    %19 = arith.subf %15, %16 : vector<32x32xf32>
    %20 = math.exp %19 : vector<32x32xf32>
    %21 = arith.addf %18, %20 : vector<32x32xf32>
    %22 = tpu.reciprocal %21 {approx = true} : vector<32x32xf32> -> vector<32x32xf32>
    %c0_6 = arith.constant 0 : index
    %c0_7 = arith.constant 0 : index
    %23 = vector.load %arg2[%c0_6, %c0_7] : memref<32x64xf32, #tpu.memory_space<vmem>>, vector<32x64xf32>
    %24 = arith.truncf %23 : vector<32x64xf32> to vector<32x64xbf16>
    %25 = arith.mulf %18, %22 : vector<32x32xf32>
    %26 = arith.truncf %25 : vector<32x32xf32> to vector<32x32xbf16>
    %27 = vector.extract_strided_slice %9 {offsets = [0, 0], sizes = [8, 32], strides = [1, 1]} : vector<16x32xf32> to vector<8x32xf32>
    %28 = arith.truncf %27 : vector<8x32xf32> to vector<8x32xbf16>
    %cst_8 = arith.constant dense<0.000000e+00> : vector<8x32xf32>
    %29 = tpu.matmul %28, %26, %cst_8 {dimension_numbers = #tpu.dot_dimension_numbers<[1], [0], [0], [1], [0, 0, 1, 1], [], []>} : vector<8x32xbf16>, vector<32x32xbf16>, vector<8x32xf32> -> vector<8x32xf32>
    %30 = arith.truncf %29 : vector<8x32xf32> to vector<8x32xbf16>
    %cst_9 = arith.constant dense<0.000000e+00> : vector<8x64xf32>
    %31 = tpu.matmul %30, %24, %cst_9 {dimension_numbers = #tpu.dot_dimension_numbers<[1], [0], [0], [1], [0, 0, 1, 1], [], []>} : vector<8x32xbf16>, vector<32x64xbf16>, vector<8x64xf32> -> vector<8x64xf32>
    %c0_10 = arith.constant 0 : index
    %c0_11 = arith.constant 0 : index
    %32 = vector.load %arg3[%c0_10, %c0_11] : memref<16x64xf32, #tpu.memory_space<vmem>>, vector<8x64xf32>
    tpu.vector_store %arg3[%c0_10, %c0_11], %31 {strides = array<i32>} : memref<16x64xf32, #tpu.memory_space<vmem>>, vector<8x64xf32>,
    %33 = arith.mulf %20, %22 : vector<32x32xf32>
    %34 = arith.truncf %33 : vector<32x32xf32> to vector<32x32xbf16>
    %35 = vector.extract_strided_slice %9 {offsets = [8, 0], sizes = [8, 32], strides = [1, 1]} : vector<16x32xf32> to vector<8x32xf32>
    %36 = arith.truncf %35 : vector<8x32xf32> to vector<8x32xbf16>
    %cst_12 = arith.constant dense<0.000000e+00> : vector<8x32xf32>
    %37 = tpu.matmul %36, %34, %cst_12 {dimension_numbers = #tpu.dot_dimension_numbers<[1], [0], [0], [1], [0, 0, 1, 1], [], []>} : vector<8x32xbf16>, vector<32x32xbf16>, vector<8x32xf32> -> vector<8x32xf32>
    %38 = arith.truncf %37 : vector<8x32xf32> to vector<8x32xbf16>
    %cst_13 = arith.constant dense<0.000000e+00> : vector<8x64xf32>
    %39 = tpu.matmul %38, %24, %cst_13 {dimension_numbers = #tpu.dot_dimension_numbers<[1], [0], [0], [1], [0, 0, 1, 1], [], []>} : vector<8x32xbf16>, vector<32x64xbf16>, vector<8x64xf32> -> vector<8x64xf32>
    %c8 = arith.constant 8 : index
    %c0_14 = arith.constant 0 : index
    %40 = vector.load %arg3[%c8, %c0_14] : memref<16x64xf32, #tpu.memory_space<vmem>>, vector<8x64xf32>
    tpu.vector_store %arg3[%c8, %c0_14], %39 {strides = array<i32>} : memref<16x64xf32, #tpu.memory_space<vmem>>, vector<8x64xf32>,
    return
  }
}

</mosaic_0001>

<llo_original>
// kernel: tpu_custom_call.1
$region0: #{tpu_custom_call.1}
  #allocation0 [shape = 'u32[]', space=smem, size = 0x4, offset = 0x4, fixed_abs, tag = 'smem constant byte address 0x4 - core index']
  #allocation1 [shape = 'u32[72,128]{1,0:T(1,128)}', space=vmem, size = 0x9000, scoped, tag = 'internal scratch']
  %s0 = inlined_call_operand.hbm [shape: f32[16,32], index: 0, kind: input, shape index: {}]
  %s1 = inlined_call_operand.hbm [shape: f32[32,96], index: 1, kind: input, shape index: {}]
  %s2 = inlined_call_operand.hbm [shape: f32[32,64], index: 2, kind: input, shape index: {}]
  %s3 = inlined_call_operand.hbm [shape: f32[16,64], index: 3, kind: output, shape index: {}]
  %s4 = sld [smem:[#allocation0]]
  $region34: #{tpu_custom_call.1} parent=0
    _
  %s6 = ssub.s32 1, %s4
  %s7 = scalar_select 0, %s6, %s4
  $region1: #{tpu_custom_call.1} parent=0
    #allocation2 [shape = 'u8[8192]{0}', space=vmem, size = 0x2000, scoped, tag = 'input window, operand 0, single buffered']
    #allocation3 [shape = 's32[1]{0}', space=sflag, size = 0x4, scoped, tag = 'scoped memory for tpu_custom_call.1']
    #allocation4 [shape = 's32[1]{0}', space=sflag, size = 0x4, scoped, tag = 'scoped memory for tpu_custom_call.1']
    #allocation5 [shape = 'u8[16384]{0}', space=vmem, size = 0x4000, scoped, tag = 'input window, operand 1, single buffered']
    #allocation6 [shape = 's32[1]{0}', space=sflag, size = 0x4, scoped, tag = 'scoped memory for tpu_custom_call.1']
    #allocation7 [shape = 'u8[16384]{0}', space=vmem, size = 0x4000, scoped, tag = 'input window, operand 2, single buffered']
    #allocation8 [shape = 'u8[8192]{0}', space=vmem, size = 0x2000, scoped, tag = 'output window, operand 0, single buffered']
    %8 = vsyncpa [#allocation3], 0
    %9 = vsyncpa [#allocation6], 0
    %10 = vsyncpa [#allocation4], 0
    // Predicated region
    $region2: #{tpu_custom_call.1} parent=1 // pred_check
      _
    $region3: #{tpu_custom_call.1} parent=1 // pred_check_branch
      %12 = sbr.rel (0) target = $region5
    $region4: #{tpu_custom_call.1} parent=1 // pred_region
      %14 = vsyncadd [#allocation3], 0
      %s15 = sshll.u32 %s0, 4
      %s16 = int_to_ptr.hbm [resolvable:$true] %s15
      %s17 = sshll.u32 [#allocation2], 4
      %s18 = int_to_ptr.vmem [resolvable:$true] %s17
      %23 = dma.hbm_to_vmem [thread:$0]  %s16, 256, %s18, [#allocation3], 128, 128, 8
    $region5: #{tpu_custom_call.1} parent=1 // pred_fallthru
      _
    // Predicated region
    $region6: #{tpu_custom_call.1} parent=1 // pred_check
      _
    $region7: #{tpu_custom_call.1} parent=1 // pred_check_branch
      %25 = sbr.rel (0) target = $region9
    $region8: #{tpu_custom_call.1} parent=1 // pred_region
      %27 = vsyncadd [#allocation6], 0
      %s28 = sshll.u32 %s1, 4
      %s29 = int_to_ptr.hbm [resolvable:$true] %s28
      %s30 = sshll.u32 [#allocation5], 4
      %s31 = int_to_ptr.vmem [resolvable:$true] %s30
      %36 = dma.hbm_to_vmem [thread:$0]  %s29, 512, %s31, [#allocation6], 128, 128, 8
    $region9: #{tpu_custom_call.1} parent=1 // pred_fallthru
      _
    // Predicated region
    $region10: #{tpu_custom_call.1} parent=1 // pred_check
      _
    $region11: #{tpu_custom_call.1} parent=1 // pred_check_branch
      %38 = sbr.rel (0) target = $region13
    $region12: #{tpu_custom_call.1} parent=1 // pred_region
      %40 = vsyncadd [#allocation6], 0
      %s41 = sshll.u32 %s2, 4
      %s42 = int_to_ptr.hbm [resolvable:$true] %s41
      %s43 = sshll.u32 [#allocation7], 4
      %s44 = int_to_ptr.vmem [resolvable:$true] %s43
      %49 = dma.hbm_to_vmem [thread:$0]  %s42, 512, %s44, [#allocation6], 128, 128, 8
    $region13: #{tpu_custom_call.1} parent=1 // pred_fallthru
      _
    // Predicated region
    $region14: #{tpu_custom_call.1} parent=1 // pred_check
      _
    $region15: #{tpu_custom_call.1} parent=1 // pred_check_branch
      %51 = sbr.rel (0) target = $region17
    $region16: #{tpu_custom_call.1} parent=1 // pred_region
      %53 = dma.done [#allocation3], 256
    $region17: #{tpu_custom_call.1} parent=1 // pred_fallthru
      _
    // Predicated region
    $region18: #{tpu_custom_call.1} parent=1 // pred_check
      _
    $region19: #{tpu_custom_call.1} parent=1 // pred_check_branch
      %55 = sbr.rel (0) target = $region21
    $region20: #{tpu_custom_call.1} parent=1 // pred_region
      %57 = dma.done [#allocation6], 512
    $region21: #{tpu_custom_call.1} parent=1 // pred_fallthru
      _
    // Predicated region
    $region22: #{tpu_custom_call.1} parent=1 // pred_check
      _
    $region23: #{tpu_custom_call.1} parent=1 // pred_check_branch
      %59 = sbr.rel (0) target = $region25
    $region24: #{tpu_custom_call.1} parent=1 // pred_region
      %61 = dma.done [#allocation6], 512
    $region25: #{tpu_custom_call.1} parent=1 // pred_fallthru
      _
    %v63 = vld [vmem:[#allocation2] sm:$0xff]
    %v64 = vld [vmem:[#allocation2 + $0x8] sm:$0xff]
    %v65 = vpack.c.bf16 %v64, %v63
    %v66 = vld [vmem:[#allocation5] sm:$0xff]
    %v67 = vld [vmem:[#allocation5 + $0x8] sm:$0xff]
    %v68 = vld [vmem:[#allocation5 + $0x10] sm:$0xff]
    %v69 = vld [vmem:[#allocation5 + $0x18] sm:$0xff]
    %v70 = vpack.c.bf16 %v67, %v66
    %v71 = vpack.c.bf16 %v69, %v68
    %vm72 = vcmask 261120
    %v74 = vsel %vm72, %v65, 0
    %76 = vmatpush.bf16.msra.mxu0 0
    %77 = vmatpush.bf16.msra.mxu0 0
    %78 = vmatpush.bf16.msra.mxu0 0
    %79 = vmatpush.bf16.msra.mxu0 0
    %80 = vmatpush.bf16.msra.mxu0 0
    %81 = vmatpush.bf16.msra.mxu0 0
    %82 = vmatpush.bf16.msra.mxu0 %v71
    %83 = vmatpush.bf16.msra.mxu0 %v70
    %84 = vmatmul.bf16.gmra.mxu0 %v74
    %v85 = vpop.f32.mrf.mxu0
    %v86 = vadd.f32 0.0, %v85
    %v87 = vpop.f32.mrf.mxu0
    %v88 = vadd.f32 0.0, %v87
    %89 = vdwg.mxu0
    %v90 = vmul.f32 %v86, 0.17677669
    %v91 = vmul.f32 %v88, 0.17677669
    %93 = vrot.lane.b32.xlu0 %v86, 96
    %v94 = vpop.permute.xlu0 %93
    %96 = vxpose.xlu0.b32.start [1/16] %v94, 128
    %97 = vxpose.xlu0.b32.cont [2/16] 0.0, 128
    %98 = vxpose.xlu0.b32.cont [3/16] 0.0, 128
    %99 = vxpose.xlu0.b32.cont [4/16] 0.0, 128
    %100 = vxpose.xlu0.b32.cont [5/16] 0.0, 128
    %101 = vxpose.xlu0.b32.cont [6/16] 0.0, 128
    %102 = vxpose.xlu0.b32.cont [7/16] 0.0, 128
    %103 = vxpose.xlu0.b32.cont [8/16] 0.0, 128
    %104 = vxpose.xlu0.b32.cont [9/16] 0.0, 128
    %105 = vxpose.xlu0.b32.cont [10/16] 0.0, 128
    %106 = vxpose.xlu0.b32.cont [11/16] 0.0, 128
    %107 = vxpose.xlu0.b32.cont [12/16] 0.0, 128
    %108 = vxpose.xlu0.b32.cont [13/16] 0.0, 128
    %109 = vxpose.xlu0.b32.cont [14/16] 0.0, 128
    %110 = vxpose.xlu0.b32.cont [15/16] 0.0, 128
    %111 = vxpose.xlu0.b32.end [16/16] 0.0, 128
    %v112 = vpop.trf.xlu0
    %v113 = vpop.trf.xlu0
    %v114 = vpop.trf.xlu0
    %v115 = vpop.trf.xlu0
    %v116 = vpop.trf.xlu0
    %v117 = vpop.trf.xlu0
    %v118 = vpop.trf.xlu0
    %v119 = vpop.trf.xlu0
    %v120 = vpop.trf.xlu0
    %v121 = vpop.trf.xlu0
    %v122 = vpop.trf.xlu0
    %v123 = vpop.trf.xlu0
    %v124 = vpop.trf.xlu0
    %v125 = vpop.trf.xlu0
    %v126 = vpop.trf.xlu0
    %v127 = vpop.trf.xlu0
    %vm128 = vcmask 64512
    %v130 = vsel %vm128, %v112, 0
    %v133 = vsel %vm128, %v113, 0
    %v136 = vsel %vm128, %v114, 0
    %v139 = vsel %vm128, %v115, 0
    %141 = vmatpush.msra.mxu0 0.0
    %142 = vmatpush.msra.mxu0 0.0
    %143 = vmatpush.msra.mxu0 0.0
    %144 = vmatpush.msra.mxu0 0.0
    %145 = vmatpush.msra.mxu0 0.0
    %146 = vmatpush.msra.mxu0 0.0
    %147 = vmatpush.msra.mxu0 0.0
    %148 = vmatpush.msra.mxu0 0.0
    %149 = vmatpush.msra.mxu0 0.0
    %150 = vmatpush.msra.mxu0 0.0
    %151 = vmatpush.msra.mxu0 0.0
    %152 = vmatpush.msra.mxu0 0.0
    %153 = vmatpush.msra.mxu0 0.0
    %154 = vmatpush.msra.mxu0 0.0
    %155 = vmatpush.msra.mxu0 0.0
    %156 = vmatpush.msra.mxu0 %v90
    %157 = vmatmul.f32.gmra.mxu0 %v130
    %v158 = vpop.f32.mrf.mxu0
    %v159 = vadd.f32 0.0, %v158
    %160 = vmatmul.f32.gmra.mxu0 %v133
    %v161 = vpop.f32.mrf.mxu0
    %v162 = vadd.f32 0.0, %v161
    %163 = vmatmul.f32.gmra.mxu0 %v136
    %v164 = vpop.f32.mrf.mxu0
    %v165 = vadd.f32 0.0, %v164
    %166 = vmatmul.f32.gmra.mxu0 %v139
    %v167 = vpop.f32.mrf.mxu0
    %v168 = vadd.f32 0.0, %v167
    %169 = vdwg.mxu0
    %171 = vrot.lane.b32.xlu0 %v88, 96
    %v172 = vpop.permute.xlu0 %171
    %174 = vxpose.xlu0.b32.start [1/16] %v172, 128
    %175 = vxpose.xlu0.b32.cont [2/16] 0.0, 128
    %176 = vxpose.xlu0.b32.cont [3/16] 0.0, 128
    %177 = vxpose.xlu0.b32.cont [4/16] 0.0, 128
    %178 = vxpose.xlu0.b32.cont [5/16] 0.0, 128
    %179 = vxpose.xlu0.b32.cont [6/16] 0.0, 128
    %180 = vxpose.xlu0.b32.cont [7/16] 0.0, 128
    %181 = vxpose.xlu0.b32.cont [8/16] 0.0, 128
    %182 = vxpose.xlu0.b32.cont [9/16] 0.0, 128
    %183 = vxpose.xlu0.b32.cont [10/16] 0.0, 128
    %184 = vxpose.xlu0.b32.cont [11/16] 0.0, 128
    %185 = vxpose.xlu0.b32.cont [12/16] 0.0, 128
    %186 = vxpose.xlu0.b32.cont [13/16] 0.0, 128
    %187 = vxpose.xlu0.b32.cont [14/16] 0.0, 128
    %188 = vxpose.xlu0.b32.cont [15/16] 0.0, 128
    %189 = vxpose.xlu0.b32.end [16/16] 0.0, 128
    %v190 = vpop.trf.xlu0
    %v191 = vpop.trf.xlu0
    %v192 = vpop.trf.xlu0
    %v193 = vpop.trf.xlu0
    %v194 = vpop.trf.xlu0
    %v195 = vpop.trf.xlu0
    %v196 = vpop.trf.xlu0
    %v197 = vpop.trf.xlu0
    %v198 = vpop.trf.xlu0
    %v199 = vpop.trf.xlu0
    %v200 = vpop.trf.xlu0
    %v201 = vpop.trf.xlu0
    %v202 = vpop.trf.xlu0
    %v203 = vpop.trf.xlu0
    %v204 = vpop.trf.xlu0
    %v205 = vpop.trf.xlu0
    %v207 = vsel %vm128, %v190, 0
    %v210 = vsel %vm128, %v191, 0
    %v213 = vsel %vm128, %v192, 0
    %v216 = vsel %vm128, %v193, 0
    %218 = vmatpush.msra.mxu0 0.0
    %219 = vmatpush.msra.mxu0 0.0
    %220 = vmatpush.msra.mxu0 0.0
    %221 = vmatpush.msra.mxu0 0.0
    %222 = vmatpush.msra.mxu0 0.0
    %223 = vmatpush.msra.mxu0 0.0
    %224 = vmatpush.msra.mxu0 0.0
    %225 = vmatpush.msra.mxu0 0.0
    %226 = vmatpush.msra.mxu0 0.0
    %227 = vmatpush.msra.mxu0 0.0
    %228 = vmatpush.msra.mxu0 0.0
    %229 = vmatpush.msra.mxu0 0.0
    %230 = vmatpush.msra.mxu0 0.0
    %231 = vmatpush.msra.mxu0 0.0
    %232 = vmatpush.msra.mxu0 0.0
    %233 = vmatpush.msra.mxu0 %v91
    %234 = vmatmul.f32.gmra.mxu0 %v207
    %v235 = vpop.f32.mrf.mxu0
    %v236 = vadd.f32 0.0, %v235
    %237 = vmatmul.f32.gmra.mxu0 %v210
    %v238 = vpop.f32.mrf.mxu0
    %v239 = vadd.f32 0.0, %v238
    %240 = vmatmul.f32.gmra.mxu0 %v213
    %v241 = vpop.f32.mrf.mxu0
    %v242 = vadd.f32 0.0, %v241
    %243 = vmatmul.f32.gmra.mxu0 %v216
    %v244 = vpop.f32.mrf.mxu0
    %v245 = vadd.f32 0.0, %v244
    %246 = vdwg.mxu0
    %v247 = vmax.f32 %v159, %v236
    %v248 = vmax.f32 %v162, %v239
    %v249 = vmax.f32 %v165, %v242
    %v250 = vmax.f32 %v168, %v245
    %v251 = vsub.f32 %v159, %v247
    %v252 = vsub.f32 %v162, %v248
    %v253 = vsub.f32 %v165, %v249
    %v254 = vsub.f32 %v168, %v250
    %v255 = vmul.f32 %v251, 1.442695
    %v256 = vpow.pop %v255
    %v257 = vmul.f32 %v252, 1.442695
    %v258 = vpow.pop %v257
    %v259 = vmul.f32 %v253, 1.442695
    %v260 = vpow.pop %v259
    %v261 = vmul.f32 %v254, 1.442695
    %v262 = vpow.pop %v261
    %v263 = vsub.f32 %v236, %v247
    %v264 = vsub.f32 %v239, %v248
    %v265 = vsub.f32 %v242, %v249
    %v266 = vsub.f32 %v245, %v250
    %v267 = vmul.f32 %v263, 1.442695
    %v268 = vpow.pop %v267
    %v269 = vmul.f32 %v264, 1.442695
    %v270 = vpow.pop %v269
    %v271 = vmul.f32 %v265, 1.442695
    %v272 = vpow.pop %v271
    %v273 = vmul.f32 %v266, 1.442695
    %v274 = vpow.pop %v273
    %v275 = vadd.f32 %v256, %v268
    %v276 = vadd.f32 %v258, %v270
    %v277 = vadd.f32 %v260, %v272
    %v278 = vadd.f32 %v262, %v274
    %v279 = vrcp.pop %v275
    %v280 = vrcp.pop %v276
    %v281 = vrcp.pop %v277
    %v282 = vrcp.pop %v278
    %v283 = vld [vmem:[#allocation7] sm:$0xff]
    %v284 = vld [vmem:[#allocation7 + $0x8] sm:$0xff]
    %v285 = vld [vmem:[#allocation7 + $0x10] sm:$0xff]
    %v286 = vld [vmem:[#allocation7 + $0x18] sm:$0xff]
    %v287 = vpack.c.bf16 %v284, %v283
    %v288 = vpack.c.bf16 %v286, %v285
    %v289 = vmul.f32 %v256, %v279
    %v290 = vmul.f32 %v258, %v280
    %v291 = vmul.f32 %v260, %v281
    %v292 = vmul.f32 %v262, %v282
    %v293 = vpack.c.bf16 %v290, %v289
    %v294 = vpack.c.bf16 %v292, %v291
    %v295 = vpack.c.bf16 %v86, %v86
    %297 = vrot.lane.b32.xlu0 %v295, 64
    %v298 = vpop.permute.xlu0 %297
    %v300 = vsel %vm72, %v298, 0
    %302 = vmatpush.bf16.msra.mxu0 0
    %303 = vmatpush.bf16.msra.mxu0 0
    %304 = vmatpush.bf16.msra.mxu0 0
    %305 = vmatpush.bf16.msra.mxu0 0
    %306 = vmatpush.bf16.msra.mxu0 0
    %307 = vmatpush.bf16.msra.mxu0 0
    %308 = vmatpush.bf16.msra.mxu0 %v294
    %309 = vmatpush.bf16.msra.mxu0 %v293
    %310 = vmatmul.bf16.gmra.mxu0 %v300
    %v311 = vpop.f32.mrf.mxu0
    %v312 = vadd.f32 0.0, %v311
    %v313 = vpop.f32.mrf.mxu0
    %314 = vdwg.mxu0
    %v315 = vpack.c.bf16 %v312, %v312
    %v317 = vsel %vm72, %v315, 0
    %319 = vmatpush.bf16.msra.mxu0 0
    %320 = vmatpush.bf16.msra.mxu0 0
    %321 = vmatpush.bf16.msra.mxu0 0
    %322 = vmatpush.bf16.msra.mxu0 0
    %323 = vmatpush.bf16.msra.mxu0 0
    %324 = vmatpush.bf16.msra.mxu0 0
    %325 = vmatpush.bf16.msra.mxu0 %v288
    %326 = vmatpush.bf16.msra.mxu0 %v287
    %327 = vmatmul.bf16.gmra.mxu0 %v317
    %v328 = vpop.f32.mrf.mxu0
    %v329 = vadd.f32 0.0, %v328
    %v330 = vpop.f32.mrf.mxu0
    %331 = vdwg.mxu0
    %vm332 = vcmask 523264
    %333 = vst.msk [vmem:[#allocation8] sm:$0xff] %vm332, %v329
    %v334 = vmul.f32 %v268, %v279
    %v335 = vmul.f32 %v270, %v280
    %v336 = vmul.f32 %v272, %v281
    %v337 = vmul.f32 %v274, %v282
    %v338 = vpack.c.bf16 %v335, %v334
    %v339 = vpack.c.bf16 %v337, %v336
    %v340 = vpack.c.bf16 %v88, %v88
    %342 = vrot.lane.b32.xlu0 %v340, 64
    %v343 = vpop.permute.xlu0 %342
    %v345 = vsel %vm72, %v343, 0
    %347 = vmatpush.bf16.msra.mxu0 0
    %348 = vmatpush.bf16.msra.mxu0 0
    %349 = vmatpush.bf16.msra.mxu0 0
    %350 = vmatpush.bf16.msra.mxu0 0
    %351 = vmatpush.bf16.msra.mxu0 0
    %352 = vmatpush.bf16.msra.mxu0 0
    %353 = vmatpush.bf16.msra.mxu0 %v339
    %354 = vmatpush.bf16.msra.mxu0 %v338
    %355 = vmatmul.bf16.gmra.mxu0 %v345
    %v356 = vpop.f32.mrf.mxu0
    %v357 = vadd.f32 0.0, %v356
    %v358 = vpop.f32.mrf.mxu0
    %359 = vdwg.mxu0
    %v360 = vpack.c.bf16 %v357, %v357
    %v362 = vsel %vm72, %v360, 0
    %364 = vmatpush.bf16.msra.mxu0 0
    %365 = vmatpush.bf16.msra.mxu0 0
    %366 = vmatpush.bf16.msra.mxu0 0
    %367 = vmatpush.bf16.msra.mxu0 0
    %368 = vmatpush.bf16.msra.mxu0 0
    %369 = vmatpush.bf16.msra.mxu0 0
    %370 = vmatpush.bf16.msra.mxu0 %v288
    %371 = vmatpush.bf16.msra.mxu0 %v287
    %372 = vmatmul.bf16.gmra.mxu0 %v362
    %v373 = vpop.f32.mrf.mxu0
    %v374 = vadd.f32 0.0, %v373
    %v375 = vpop.f32.mrf.mxu0
    %376 = vdwg.mxu0
    %377 = vst.msk [vmem:[#allocation8 + $0x8] sm:$0xff] %vm332, %v374
    // Predicated region
    $region26: #{tpu_custom_call.1} parent=1 // pred_check
      _
    $region27: #{tpu_custom_call.1} parent=1 // pred_check_branch
      %379 = sbr.rel (0) target = $region29
    $region28: #{tpu_custom_call.1} parent=1 // pred_region
      %381 = vsyncadd [#allocation4], 0
      %s382 = sshll.u32 [#allocation8], 4
      %s383 = int_to_ptr.vmem [resolvable:$true] %s382
      %s384 = sshll.u32 %s3, 4
      %s385 = int_to_ptr.hbm [resolvable:$true] %s384
      %390 = dma.vmem_to_hbm [thread:$0]  %s383, 256, %s385, [#allocation4], 128, 128, 8
    $region29: #{tpu_custom_call.1} parent=1 // pred_fallthru
      _
    // Predicated region
    $region30: #{tpu_custom_call.1} parent=1 // pred_check
      _
    $region31: #{tpu_custom_call.1} parent=1 // pred_check_branch
      %392 = sbr.rel (0) target = $region33
    $region32: #{tpu_custom_call.1} parent=1 // pred_region
      %394 = dma.done [#allocation4], 256
    $region33: #{tpu_custom_call.1} parent=1 // pred_fallthru
      _
    %395 = vsyncpa [#allocation3], 1
    %396 = vsyncpa [#allocation6], 1
    %397 = vsyncpa [#allocation4], 1

</llo_original>
